<compile_context>
chip_gen: v6e
topology: v6e:2x2x1
jax: 0.10.0
libtpu: 0.0.40
codegen_flags: <defaults>
</compile_context>

<pallas_src>
import math

import jax
import jax.numpy as jnp
from jax.experimental import pallas as pl
from jax.experimental.pallas import tpu as pltpu


def _round_up(x, m):
    return -(-x // m) * m


def _pe_kernel(t_ref, rhs_ref, phase_ref, scale_ref, out_ref):
    # t_ref:     (TILE_G, K)  per grouped output row: [t_0 .. t_{G-1}, 1, 0-pad...]
    # rhs_ref:   (K, W)       rows 0..G-1: group-masked 2*pi*freq (sin|cos halves);
    #                         row G: 0 on sin lanes, pi/2 on cos lanes; zero rows pad K to 8n.
    # phase_ref: (1, W)       phase_shift tiled G times
    # scale_ref: (1,) SMEM    scalar scale_factor
    # out_ref:   (TILE_G, W)  lane-dense positional-encoding tile
    #
    # MXU does the lane expansion and the +pi/2 cos offset in one small matmul (K tiny,
    # N = W lane-dense), leaving only sin (EUP) and scale/phase (2 VALU ops) per element.
    x = jnp.dot(t_ref[...], rhs_ref[...],
                preferred_element_type=jnp.float32,
                precision=jax.lax.Precision.HIGHEST)          # (TILE_G, W)
    fe = jnp.sin(x)                                           # cos lanes already have +pi/2
    out_ref[...] = (scale_ref[0] * fe + phase_ref[...]).astype(out_ref.dtype)


def continuous_positional_encoding(timestamps, freq_bands, scale_factor, phase_shift,
                                   *, target_block_bytes=8 << 20,
                                   out_dtype=jnp.float32,
                                   min_grid_steps=8):
    """Continuous positional encoding via a Pallas TPU kernel.

    timestamps:  float array of shape (..., L)  (e.g. (B, L) or (L,))
    freq_bands:  (d_model // 2,)
    scale_factor:(1,)
    phase_shift: (d_model,)
    returns:     (..., L, d_model) in out_dtype (default float32)
    """
    d_half = int(freq_bands.shape[0])
    d_model = int(phase_shift.shape[0])
    assert d_model == 2 * d_half, "phase_shift must have 2 * len(freq_bands) entries"

    orig_shape = timestamps.shape
    rows = 1
    for s in orig_shape:
        rows *= int(s)

    # Lane-dense grouping: pack G timestamps per grouped output row so W = G*d_model is a
    # multiple of 128 lanes (full-width unmasked stores).  Generalized: G = lcm(d_model,128)
    # / d_model whenever W stays <= 512 lanes; otherwise G = 1 (still correct; masked stores
    # only when d_model % 128 != 0).
    lcm = d_model * 128 // math.gcd(d_model, 128)
    g_count = lcm // d_model if lcm <= 512 else 1
    w = g_count * d_model

    # ---- tiny O(W) constant operands, built once in the wrapper ----
    two_pi_f = (2.0 * math.pi) * freq_bands.reshape(d_half).astype(jnp.float32)   # fold 2*pi
    pattern = jnp.concatenate([two_pi_f, two_pi_f])                                # (d_model,)
    freq_row = jnp.tile(pattern, g_count)                                          # (W,)
    group_id = jnp.arange(w, dtype=jnp.int32) // d_model                           # (W,)
    freq_sel = jnp.where(
        group_id[None, :] == jnp.arange(g_count, dtype=jnp.int32)[:, None],
        freq_row[None, :], 0.0).astype(jnp.float32)                                # (G, W)
    offs_row = jnp.tile(
        jnp.concatenate([jnp.zeros((d_half,), jnp.float32),
                         jnp.full((d_half,), 0.5 * math.pi, jnp.float32)]),
        g_count)[None, :]                                                          # (1, W)
    rhs = jnp.concatenate([freq_sel, offs_row], axis=0)                            # (G+1, W)
    k_dim = g_count + 1
    k_pad = _round_up(k_dim, 8)
    if k_pad > k_dim:
        rhs = jnp.pad(rhs, ((0, k_pad - k_dim), (0, 0)))                           # (K, W)

    phase_row = jnp.tile(phase_shift.reshape(d_model).astype(jnp.float32),
                         g_count)[None, :]                                         # (1, W)
    scale1 = scale_factor.reshape(1).astype(jnp.float32)                           # (1,) SMEM

    # ---- row tiling: ~target_block_bytes output blocks (rows multiple of 8), but keep at
    #      least ~min_grid_steps grid steps for large inputs (v7x 2-TC load balance) ----
    itemsize = jnp.dtype(out_dtype).itemsize
    r_g = max(1, -(-rows // g_count))                        # grouped rows (ceil)
    tgt_g = max(8, (target_block_bytes // (itemsize * w)) // 8 * 8)
    steps_cap = _round_up(-(-r_g // min_grid_steps), 8)      # tile size giving ~min steps
    tile_g = max(8, min(tgt_g, steps_cap, _round_up(r_g, 8)))
    r_g_pad = _round_up(r_g, tile_g)
    rows_pad = r_g_pad * g_count

    t_flat = timestamps.reshape(-1).astype(jnp.float32)
    if rows_pad > rows:
        t_flat = jnp.pad(t_flat, (0, rows_pad - rows))
    lhs = t_flat.reshape(r_g_pad, g_count)
    lhs = jnp.concatenate([lhs, jnp.ones((r_g_pad, 1), jnp.float32)], axis=1)      # 1-column
    if k_pad > k_dim:
        lhs = jnp.pad(lhs, ((0, 0), (0, k_pad - k_dim)))                           # (rows, K)

    grid = (r_g_pad // tile_g,)

    cost = pl.CostEstimate(
        flops=2 * r_g_pad * w * k_pad + 2 * r_g_pad * w,
        transcendentals=r_g_pad * w,
        bytes_accessed=4 * r_g_pad * k_pad + itemsize * r_g_pad * w + 4 * (k_pad + 2) * w,
    )

    out = pl.pallas_call(
        _pe_kernel,
        out_shape=jax.ShapeDtypeStruct((r_g_pad, w), out_dtype),
        grid_spec=pltpu.PrefetchScalarGridSpec(
            num_scalar_prefetch=0,
            grid=grid,
            in_specs=[
                pl.BlockSpec((tile_g, k_pad), lambda i: (i, 0)),    # [timestamps | 1 | 0] tile
                pl.BlockSpec((k_pad, w), lambda i: (0, 0)),         # 2*pi*freq sel + pi/2 row
                pl.BlockSpec((1, w), lambda i: (0, 0)),             # phase shift (tiled)
                pl.BlockSpec(memory_space=pltpu.MemorySpace.SMEM),  # scalar scale factor
            ],
            out_specs=pl.BlockSpec((tile_g, w), lambda i: (i, 0)),
        ),
        compiler_params=pltpu.CompilerParams(
            dimension_semantics=("parallel",),
            vmem_limit_bytes=40 << 20,
        ),
        cost_estimate=cost,
    )(lhs, rhs, phase_row, scale1)

    out = out.reshape(rows_pad, d_model)        # free row-major reshape of the grouped layout
    if rows_pad > rows:
        out = out[:rows]
    return out.reshape(*orig_shape, d_model)


def continuous_positional_encoding_forward(x, freq_bands, scale_factor, phase_shift,
                                           timestamps=None):
    """Mirrors ContinuousPositionalEncoding.forward: timestamps=None -> arange(L)."""
    if timestamps is None:
        timestamps = jnp.arange(x.shape[1], dtype=jnp.float32)
    return continuous_positional_encoding(timestamps, freq_bands, scale_factor, phase_shift)


def continuous_positional_encoding_ref(timestamps, freq_bands, scale_factor, phase_shift):
    """Pure-JAX reference mirroring the PyTorch forward."""
    t = timestamps.astype(jnp.float32)
    x_proj = 2.0 * math.pi * t[..., None] * freq_bands
    fe = jnp.concatenate([jnp.sin(x_proj), jnp.cos(x_proj)], axis=-1)
    return scale_factor * fe + phase_shift


if __name__ == "__main__":
    key = jax.random.PRNGKey(0)
    k_freq, k_x, k_ts = jax.random.split(key, 3)

    B, L, d_model = 2, 8, 32
    d_half = d_model // 2

    # Parameters (module shapes); non-trivial scale/phase to exercise those paths.
    freq_bands = jax.random.normal(k_freq, (d_half,), dtype=jnp.float32)
    scale_factor = jnp.array([1.25], dtype=jnp.float32)
    phase_shift = jnp.linspace(-0.5, 0.5, d_model, dtype=jnp.float32)

    # x is only used for its sequence length in the module's forward.
    x = jax.random.normal(k_x, (B, L, d_model), dtype=jnp.float32)
    timestamps = jax.random.uniform(k_ts, (B, L), dtype=jnp.float32) * 10.0

    # Tolerances: x_proj reaches O(100); fp32 sin/cos there plus the HIGHEST-precision MXU
    # expansion have ~1e-5-scale spread vs the mathematically equivalent reference.
    ATOL, RTOL = 2e-4, 1e-4

    # Case 1: explicit timestamps (B, L) -> pe (B, L, d_model)
    pe = continuous_positional_encoding_forward(x, freq_bands, scale_factor, phase_shift,
                                                timestamps=timestamps)
    pe = jax.block_until_ready(pe)
    pe_ref = continuous_positional_encoding_ref(timestamps, freq_bands, scale_factor, phase_shift)
    assert pe.shape == (B, L, d_model)
    assert jnp.allclose(pe, pe_ref, atol=ATOL, rtol=RTOL)

    # Case 2: timestamps=None -> arange(L), pe (L, d_model) (matches PyTorch default path)
    pe_none = continuous_positional_encoding_forward(x, freq_bands, scale_factor, phase_shift)
    pe_none = jax.block_until_ready(pe_none)
    ts_default = jnp.arange(L, dtype=jnp.float32)
    pe_none_ref = continuous_positional_encoding_ref(ts_default, freq_bands, scale_factor,
                                                     phase_shift)
    assert pe_none.shape == (L, d_model)
    assert jnp.allclose(pe_none, pe_none_ref, atol=ATOL, rtol=RTOL)

    print("KERNEL_OK")
</pallas_src>

<mosaic_0001>
module attributes {stable_mosaic.version = 11 : i64} {
  func.func @_pe_kernel(%arg0: i32, %arg1: memref<8x8xf32, #tpu.memory_space<vmem>>, %arg2: memref<8x128xf32, #tpu.memory_space<vmem>>, %arg3: memref<1x128xf32, #tpu.memory_space<vmem>>, %arg4: memref<1xf32, #tpu.memory_space<smem>>, %arg5: memref<8x128xf32, #tpu.memory_space<vmem>>) attributes {dimension_semantics = [#tpu.dimension_semantics<parallel>], iteration_bounds = array<i64: 1>, scalar_prefetch = 0 : i64, scratch_operands = 0 : i64, tpu.core_type = #tpu.core_type<tc>, window_params = [{transform_indices = @transform_0, window_bounds = array<i64: 8, 8>}, {pipeline_mode = #tpu.pipeline_mode<synchronous>, transform_indices = @transform_1, window_bounds = array<i64: 8, 128>}, {pipeline_mode = #tpu.pipeline_mode<synchronous>, transform_indices = @transform_2, window_bounds = array<i64: 1, 128>}, {transform_indices = @transform_3, window_bounds = array<i64: 1>}, {transform_indices = @transform_4, window_bounds = array<i64: 8, 128>}]} {
    %c0 = arith.constant 0 : index
    %c0_0 = arith.constant 0 : index
    %0 = vector.load %arg1[%c0, %c0_0] : memref<8x8xf32, #tpu.memory_space<vmem>>, vector<8x8xf32>
    %c0_1 = arith.constant 0 : index
    %c0_2 = arith.constant 0 : index
    %1 = vector.load %arg2[%c0_1, %c0_2] : memref<8x128xf32, #tpu.memory_space<vmem>>, vector<8x128xf32>
    %cst = arith.constant dense<0.000000e+00> : vector<8x128xf32>
    %2 = tpu.matmul %0, %1, %cst {dimension_numbers = #tpu.dot_dimension_numbers<[1], [0], [0], [1], [0, 0, 1, 1], [], []>, precision = #tpu.contract_precision<fp32>} : vector<8x8xf32>, vector<8x128xf32>, vector<8x128xf32> -> vector<8x128xf32>
    %3 = math.sin %2 : vector<8x128xf32>
    %c0_3 = arith.constant 0 : index
    %4 = memref.load %arg4[%c0_3] : memref<1xf32, #tpu.memory_space<smem>>
    %5 = vector.broadcast %4 : f32 to vector<8x128xf32>
    %6 = arith.mulf %5, %3 : vector<8x128xf32>
    %c0_4 = arith.constant 0 : index
    %c0_5 = arith.constant 0 : index
    %7 = vector.load %arg3[%c0_4, %c0_5] : memref<1x128xf32, #tpu.memory_space<vmem>>, vector<1x128xf32>
    %8 = vector.broadcast %7 : vector<1x128xf32> to vector<8x128xf32>
    %9 = arith.addf %6, %8 : vector<8x128xf32>
    %c0_6 = arith.constant 0 : index
    %c0_7 = arith.constant 0 : index
    %10 = vector.load %arg5[%c0_6, %c0_7] : memref<8x128xf32, #tpu.memory_space<vmem>>, vector<8x128xf32>
    tpu.vector_store %arg5[%c0_6, %c0_7], %9 {strides = array<i32>} : memref<8x128xf32, #tpu.memory_space<vmem>>, vector<8x128xf32>,
    return
  }
  func.func @transform_0(%arg0: i32) -> (i32, i32) {
    %c0_i32 = arith.constant 0 : i32
    %c0_i32_0 = arith.constant 0 : i32
    return %arg0, %c0_i32 : i32, i32
  }
  func.func @transform_1(%arg0: i32) -> (i32, i32) {
    %c0_i32 = arith.constant 0 : i32
    %c0_i32_0 = arith.constant 0 : i32
    %c0_i32_1 = arith.constant 0 : i32
    return %c0_i32, %c0_i32_0 : i32, i32
  }
  func.func @transform_2(%arg0: i32) -> (i32, i32) {
    %c0_i32 = arith.constant 0 : i32
    %c0_i32_0 = arith.constant 0 : i32
    %c0_i32_1 = arith.constant 0 : i32
    return %c0_i32, %c0_i32_0 : i32, i32
  }
  func.func @transform_3(%arg0: i32) -> i32 {
    %c0_i32 = arith.constant 0 : i32
    %c0_i32_0 = arith.constant 0 : i32
    return %c0_i32 : i32
  }
  func.func @transform_4(%arg0: i32) -> (i32, i32) {
    %c0_i32 = arith.constant 0 : i32
    %c0_i32_0 = arith.constant 0 : i32
    return %arg0, %c0_i32 : i32, i32
  }
}

</mosaic_0001>

<llo_original>
// kernel: tpu_custom_call.1
$region0: #{tpu_custom_call.1}
  #allocation0 [shape = 'u32[]', space=smem, size = 0x4, offset = 0x4, fixed_abs, tag = 'smem constant byte address 0x4 - core index']
  #allocation1 [shape = 'u32[144,128]{1,0:T(1,128)}', space=vmem, size = 0x12000, scoped, tag = 'internal scratch']
  #allocation2 [shape = 'f32[1]{0:T(128)S(6)}', space=smem, size = 0x200, scoped, tag = 'scoped memory for tpu_custom_call.1']
  %s0 = inlined_call_operand.hbm [shape: f32[8,8], index: 0, kind: input, shape index: {}]
  %s1 = inlined_call_operand.hbm [shape: f32[8,128], index: 1, kind: input, shape index: {}]
  %s2 = inlined_call_operand.vmem [shape: f32[1,128], index: 2, kind: input, shape index: {}]
  %s3 = inlined_call_operand.<no memory space> [shape: f32[1], index: 3, kind: input, shape index: {}]
  %s4 = inlined_call_operand.hbm [shape: f32[8,128], index: 4, kind: output, shape index: {}]
  %s5 = sld [smem:[#allocation0]]
  $region34: #{tpu_custom_call.1} parent=0
    _
  %s7 = ssub.s32 1, %s5
  %s8 = scalar_select 0, %s7, %s5
  %9 = sst [smem:[#allocation2]] %s3
  $region1: #{tpu_custom_call.1} parent=0
    #allocation3 [shape = 'u8[4096]{0}', space=vmem, size = 0x1000, scoped, tag = 'input window, operand 0, single buffered']
    #allocation4 [shape = 's32[1]{0}', space=sflag, size = 0x4, scoped, tag = 'scoped memory for tpu_custom_call.1']
    #allocation5 [shape = 's32[1]{0}', space=sflag, size = 0x4, scoped, tag = 'scoped memory for tpu_custom_call.1']
    #allocation6 [shape = 'u8[4096]{0}', space=vmem, size = 0x1000, scoped, tag = 'input window, operand 1, single buffered']
    #allocation7 [shape = 's32[1]{0}', space=sflag, size = 0x4, scoped, tag = 'scoped memory for tpu_custom_call.1']
    #allocation8 [shape = 'u8[4096]{0}', space=vmem, size = 0x1000, scoped, tag = 'output window, operand 0, single buffered']
    %10 = vsyncpa [#allocation4], 0
    %11 = vsyncpa [#allocation7], 0
    %12 = vsyncpa [#allocation5], 0
    // Predicated region
    $region2: #{tpu_custom_call.1} parent=1 // pred_check
      _
    $region3: #{tpu_custom_call.1} parent=1 // pred_check_branch
      %14 = sbr.rel (0) target = $region5
    $region4: #{tpu_custom_call.1} parent=1 // pred_region
      %s16 = ssub.s32 128, 128
      %17 = vsyncadd [#allocation4], %s16
      %s19 = sshll.u32 [#allocation3], 4
      %s20 = int_to_ptr.vmem [resolvable:$true] %s19
      %22 = dma.hbm_to_vmem [thread:$0]  %s0, 128, %s20, [#allocation4]
    $region5: #{tpu_custom_call.1} parent=1 // pred_fallthru
      _
    // Predicated region
    $region6: #{tpu_custom_call.1} parent=1 // pred_check
      _
    $region7: #{tpu_custom_call.1} parent=1 // pred_check_branch
      %24 = sbr.rel (0) target = $region9
    $region8: #{tpu_custom_call.1} parent=1 // pred_region
      %s26 = ssub.s32 128, 128
      %27 = vsyncadd [#allocation7], %s26
      %s29 = sshll.u32 [#allocation6], 4
      %s30 = int_to_ptr.vmem [resolvable:$true] %s29
      %32 = dma.hbm_to_vmem [thread:$0]  %s1, 128, %s30, [#allocation7]
    $region9: #{tpu_custom_call.1} parent=1 // pred_fallthru
      _
    // Predicated region
    $region10: #{tpu_custom_call.1} parent=1 // pred_check
      _
    $region11: #{tpu_custom_call.1} parent=1 // pred_check_branch
      %34 = sbr.rel (0) target = $region13
    $region12: #{tpu_custom_call.1} parent=1 // pred_region
      _
    $region13: #{tpu_custom_call.1} parent=1 // pred_fallthru
      _
    // Predicated region
    $region14: #{tpu_custom_call.1} parent=1 // pred_check
      _
    $region15: #{tpu_custom_call.1} parent=1 // pred_check_branch
      %36 = sbr.rel (0) target = $region17
    $region16: #{tpu_custom_call.1} parent=1 // pred_region
      _
    $region17: #{tpu_custom_call.1} parent=1 // pred_fallthru
      _
    // Predicated region
    $region18: #{tpu_custom_call.1} parent=1 // pred_check
      _
    $region19: #{tpu_custom_call.1} parent=1 // pred_check_branch
      %38 = sbr.rel (0) target = $region21
    $region20: #{tpu_custom_call.1} parent=1 // pred_region
      %39 = dma.done [#allocation4], 128
    $region21: #{tpu_custom_call.1} parent=1 // pred_fallthru
      _
    // Predicated region
    $region22: #{tpu_custom_call.1} parent=1 // pred_check
      _
    $region23: #{tpu_custom_call.1} parent=1 // pred_check_branch
      %41 = sbr.rel (0) target = $region25
    $region24: #{tpu_custom_call.1} parent=1 // pred_region
      %42 = dma.done [#allocation7], 128
    $region25: #{tpu_custom_call.1} parent=1 // pred_fallthru
      _
    %v43 = vld [vmem:[#allocation3] sm:$0xff]
    %v44 = vld [vmem:[#allocation6] sm:$0xff]
    %vm45 = vcmask 64512
    %v47 = vsel %vm45, %v43, 0
    %49 = vmatprep.subr.mxu0 0.0
    %50 = vmatpush1.msra.mxu0 0.0
    %51 = vmatprep.subr.mxu0 0.0
    %52 = vmatpush1.msra.mxu0 0.0
    %53 = vmatprep.subr.mxu0 0.0
    %54 = vmatpush1.msra.mxu0 0.0
    %55 = vmatprep.subr.mxu0 0.0
    %56 = vmatpush1.msra.mxu0 0.0
    %57 = vmatprep.subr.mxu0 0.0
    %58 = vmatpush1.msra.mxu0 0.0
    %59 = vmatprep.subr.mxu0 0.0
    %60 = vmatpush1.msra.mxu0 0.0
    %61 = vmatprep.subr.mxu0 0.0
    %62 = vmatpush1.msra.mxu0 0.0
    %63 = vmatprep.subr.mxu0 0.0
    %64 = vmatpush1.msra.mxu0 0.0
    %65 = vmatprep.subr.mxu0 0.0
    %66 = vmatpush1.msra.mxu0 0.0
    %67 = vmatprep.subr.mxu0 0.0
    %68 = vmatpush1.msra.mxu0 0.0
    %69 = vmatprep.subr.mxu0 0.0
    %70 = vmatpush1.msra.mxu0 0.0
    %71 = vmatprep.subr.mxu0 0.0
    %72 = vmatpush1.msra.mxu0 0.0
    %73 = vmatprep.subr.mxu0 0.0
    %74 = vmatpush1.msra.mxu0 0.0
    %75 = vmatprep.subr.mxu0 0.0
    %76 = vmatpush1.msra.mxu0 0.0
    %77 = vmatprep.subr.mxu0 0.0
    %78 = vmatpush1.msra.mxu0 0.0
    %79 = vmatprep.subr.mxu0 0.0
    %v80 = vand.u32 %v44, 4294901760
    %81 = vmatpush1.msra.mxu0 %v80
    %82 = vmatprep.subr.mxu0 0.0
    %83 = vmatpush2.msra.mxu0 0.0
    %84 = vmatprep.subr.mxu0 0.0
    %85 = vmatpush2.msra.mxu0 0.0
    %86 = vmatprep.subr.mxu0 0.0
    %87 = vmatpush2.msra.mxu0 0.0
    %88 = vmatprep.subr.mxu0 0.0
    %89 = vmatpush2.msra.mxu0 0.0
    %90 = vmatprep.subr.mxu0 0.0
    %91 = vmatpush2.msra.mxu0 0.0
    %92 = vmatprep.subr.mxu0 0.0
    %93 = vmatpush2.msra.mxu0 0.0
    %94 = vmatprep.subr.mxu0 0.0
    %95 = vmatpush2.msra.mxu0 0.0
    %96 = vmatprep.subr.mxu0 0.0
    %97 = vmatpush2.msra.mxu0 0.0
    %98 = vmatprep.subr.mxu0 0.0
    %99 = vmatpush2.msra.mxu0 0.0
    %100 = vmatprep.subr.mxu0 0.0
    %101 = vmatpush2.msra.mxu0 0.0
    %102 = vmatprep.subr.mxu0 0.0
    %103 = vmatpush2.msra.mxu0 0.0
    %104 = vmatprep.subr.mxu0 0.0
    %105 = vmatpush2.msra.mxu0 0.0
    %106 = vmatprep.subr.mxu0 0.0
    %107 = vmatpush2.msra.mxu0 0.0
    %108 = vmatprep.subr.mxu0 0.0
    %109 = vmatpush2.msra.mxu0 0.0
    %110 = vmatprep.subr.mxu0 0.0
    %111 = vmatpush2.msra.mxu0 0.0
    %112 = vmatprep.subr.mxu0 0.0
    %113 = vmatpush2.msra.mxu0 0.0
    %114 = vmatprep.mubr.f32.mxu0 0.0
    %v115 = vand.u32 %v47, 4294901760
    %v116 = vsub.f32 %v47, %v115
    %v117 = vand.u32 %v116, 4294901760
    %v118 = vsub.f32 %v116, %v117
    %v119 = vand.u32 %v118, 4294901760
    %120 = vmatmul.mubr.f32.gmra.mxu0 %v119
    %v121 = vpop.f32.mrf.mxu0
    %v122 = vadd.f32 0.0, %v121
    %v123 = vpop.f32.mrf.mxu0
    %124 = vdwg.mxu0
    %125 = vmatprep.subr.mxu0 0.0
    %126 = vmatpush1.msra.mxu0 0.0
    %127 = vmatprep.subr.mxu0 0.0
    %128 = vmatpush1.msra.mxu0 0.0
    %129 = vmatprep.subr.mxu0 0.0
    %130 = vmatpush1.msra.mxu0 0.0
    %131 = vmatprep.subr.mxu0 0.0
    %132 = vmatpush1.msra.mxu0 0.0
    %133 = vmatprep.subr.mxu0 0.0
    %134 = vmatpush1.msra.mxu0 0.0
    %135 = vmatprep.subr.mxu0 0.0
    %136 = vmatpush1.msra.mxu0 0.0
    %137 = vmatprep.subr.mxu0 0.0
    %138 = vmatpush1.msra.mxu0 0.0
    %139 = vmatprep.subr.mxu0 0.0
    %140 = vmatpush1.msra.mxu0 0.0
    %141 = vmatprep.subr.mxu0 0.0
    %142 = vmatpush1.msra.mxu0 0.0
    %143 = vmatprep.subr.mxu0 0.0
    %144 = vmatpush1.msra.mxu0 0.0
    %145 = vmatprep.subr.mxu0 0.0
    %146 = vmatpush1.msra.mxu0 0.0
    %147 = vmatprep.subr.mxu0 0.0
    %148 = vmatpush1.msra.mxu0 0.0
    %149 = vmatprep.subr.mxu0 0.0
    %150 = vmatpush1.msra.mxu0 0.0
    %151 = vmatprep.subr.mxu0 0.0
    %152 = vmatpush1.msra.mxu0 0.0
    %153 = vmatprep.subr.mxu0 0.0
    %154 = vmatpush1.msra.mxu0 0.0
    %155 = vmatprep.subr.mxu0 0.0
    %v156 = vand.u32 %v44, 4294901760
    %v157 = vsub.f32 %v44, %v156
    %v158 = vand.u32 %v157, 4294901760
    %v159 = vsub.f32 %v157, %v158
    %v160 = vand.u32 %v159, 4294901760
    %161 = vmatpush1.msra.mxu0 %v160
    %162 = vmatprep.subr.mxu0 0.0
    %163 = vmatpush2.msra.mxu0 0.0
    %164 = vmatprep.subr.mxu0 0.0
    %165 = vmatpush2.msra.mxu0 0.0
    %166 = vmatprep.subr.mxu0 0.0
    %167 = vmatpush2.msra.mxu0 0.0
    %168 = vmatprep.subr.mxu0 0.0
    %169 = vmatpush2.msra.mxu0 0.0
    %170 = vmatprep.subr.mxu0 0.0
    %171 = vmatpush2.msra.mxu0 0.0
    %172 = vmatprep.subr.mxu0 0.0
    %173 = vmatpush2.msra.mxu0 0.0
    %174 = vmatprep.subr.mxu0 0.0
    %175 = vmatpush2.msra.mxu0 0.0
    %176 = vmatprep.subr.mxu0 0.0
    %177 = vmatpush2.msra.mxu0 0.0
    %178 = vmatprep.subr.mxu0 0.0
    %179 = vmatpush2.msra.mxu0 0.0
    %180 = vmatprep.subr.mxu0 0.0
    %181 = vmatpush2.msra.mxu0 0.0
    %182 = vmatprep.subr.mxu0 0.0
    %183 = vmatpush2.msra.mxu0 0.0
    %184 = vmatprep.subr.mxu0 0.0
    %185 = vmatpush2.msra.mxu0 0.0
    %186 = vmatprep.subr.mxu0 0.0
    %187 = vmatpush2.msra.mxu0 0.0
    %188 = vmatprep.subr.mxu0 0.0
    %189 = vmatpush2.msra.mxu0 0.0
    %190 = vmatprep.subr.mxu0 0.0
    %191 = vmatpush2.msra.mxu0 0.0
    %192 = vmatprep.subr.mxu0 0.0
    %193 = vmatpush2.msra.mxu0 0.0
    %194 = vmatprep.mubr.f32.mxu0 0.0
    %v195 = vand.u32 %v47, 4294901760
    %196 = vmatmul.mubr.f32.gmra.mxu0 %v195
    %v197 = vpop.f32.mrf.mxu0
    %v198 = vadd.f32 %v122, %v197
    %v199 = vpop.f32.mrf.mxu0
    %200 = vdwg.mxu0
    %201 = vmatprep.subr.mxu0 0.0
    %202 = vmatpush1.msra.mxu0 0.0
    %203 = vmatprep.subr.mxu0 0.0
    %204 = vmatpush1.msra.mxu0 0.0
    %205 = vmatprep.subr.mxu0 0.0
    %206 = vmatpush1.msra.mxu0 0.0
    %207 = vmatprep.subr.mxu0 0.0
    %208 = vmatpush1.msra.mxu0 0.0
    %209 = vmatprep.subr.mxu0 0.0
    %210 = vmatpush1.msra.mxu0 0.0
    %211 = vmatprep.subr.mxu0 0.0
    %212 = vmatpush1.msra.mxu0 0.0
    %213 = vmatprep.subr.mxu0 0.0
    %214 = vmatpush1.msra.mxu0 0.0
    %215 = vmatprep.subr.mxu0 0.0
    %216 = vmatpush1.msra.mxu0 0.0
    %217 = vmatprep.subr.mxu0 0.0
    %218 = vmatpush1.msra.mxu0 0.0
    %219 = vmatprep.subr.mxu0 0.0
    %220 = vmatpush1.msra.mxu0 0.0
    %221 = vmatprep.subr.mxu0 0.0
    %222 = vmatpush1.msra.mxu0 0.0
    %223 = vmatprep.subr.mxu0 0.0
    %224 = vmatpush1.msra.mxu0 0.0
    %225 = vmatprep.subr.mxu0 0.0
    %226 = vmatpush1.msra.mxu0 0.0
    %227 = vmatprep.subr.mxu0 0.0
    %228 = vmatpush1.msra.mxu0 0.0
    %229 = vmatprep.subr.mxu0 0.0
    %230 = vmatpush1.msra.mxu0 0.0
    %231 = vmatprep.subr.mxu0 0.0
    %v232 = vand.u32 %v44, 4294901760
    %v233 = vsub.f32 %v44, %v232
    %234 = vmatpush1.msra.mxu0 %v233
    %235 = vmatprep.subr.mxu0 0.0
    %236 = vmatpush2.msra.mxu0 0.0
    %237 = vmatprep.subr.mxu0 0.0
    %238 = vmatpush2.msra.mxu0 0.0
    %239 = vmatprep.subr.mxu0 0.0
    %240 = vmatpush2.msra.mxu0 0.0
    %241 = vmatprep.subr.mxu0 0.0
    %242 = vmatpush2.msra.mxu0 0.0
    %243 = vmatprep.subr.mxu0 0.0
    %244 = vmatpush2.msra.mxu0 0.0
    %245 = vmatprep.subr.mxu0 0.0
    %246 = vmatpush2.msra.mxu0 0.0
    %247 = vmatprep.subr.mxu0 0.0
    %248 = vmatpush2.msra.mxu0 0.0
    %249 = vmatprep.subr.mxu0 0.0
    %250 = vmatpush2.msra.mxu0 0.0
    %251 = vmatprep.subr.mxu0 0.0
    %252 = vmatpush2.msra.mxu0 0.0
    %253 = vmatprep.subr.mxu0 0.0
    %254 = vmatpush2.msra.mxu0 0.0
    %255 = vmatprep.subr.mxu0 0.0
    %256 = vmatpush2.msra.mxu0 0.0
    %257 = vmatprep.subr.mxu0 0.0
    %258 = vmatpush2.msra.mxu0 0.0
    %259 = vmatprep.subr.mxu0 0.0
    %260 = vmatpush2.msra.mxu0 0.0
    %261 = vmatprep.subr.mxu0 0.0
    %262 = vmatpush2.msra.mxu0 0.0
    %263 = vmatprep.subr.mxu0 0.0
    %264 = vmatpush2.msra.mxu0 0.0
    %265 = vmatprep.subr.mxu0 0.0
    %266 = vmatpush2.msra.mxu0 0.0
    %267 = vmatprep.mubr.f32.mxu0 0.0
    %v268 = vand.u32 %v47, 4294901760
    %v269 = vsub.f32 %v47, %v268
    %270 = vmatmul.mubr.f32.gmra.mxu0 %v269
    %v271 = vpop.f32.mrf.mxu0
    %v272 = vadd.f32 %v198, %v271
    %v273 = vpop.f32.mrf.mxu0
    %274 = vdwg.mxu0
    %275 = vmatprep.subr.mxu0 0.0
    %276 = vmatpush1.msra.mxu0 0.0
    %277 = vmatprep.subr.mxu0 0.0
    %278 = vmatpush1.msra.mxu0 0.0
    %279 = vmatprep.subr.mxu0 0.0
    %280 = vmatpush1.msra.mxu0 0.0
    %281 = vmatprep.subr.mxu0 0.0
    %282 = vmatpush1.msra.mxu0 0.0
    %283 = vmatprep.subr.mxu0 0.0
    %284 = vmatpush1.msra.mxu0 0.0
    %285 = vmatprep.subr.mxu0 0.0
    %286 = vmatpush1.msra.mxu0 0.0
    %287 = vmatprep.subr.mxu0 0.0
    %288 = vmatpush1.msra.mxu0 0.0
    %289 = vmatprep.subr.mxu0 0.0
    %290 = vmatpush1.msra.mxu0 0.0
    %291 = vmatprep.subr.mxu0 0.0
    %292 = vmatpush1.msra.mxu0 0.0
    %293 = vmatprep.subr.mxu0 0.0
    %294 = vmatpush1.msra.mxu0 0.0
    %295 = vmatprep.subr.mxu0 0.0
    %296 = vmatpush1.msra.mxu0 0.0
    %297 = vmatprep.subr.mxu0 0.0
    %298 = vmatpush1.msra.mxu0 0.0
    %299 = vmatprep.subr.mxu0 0.0
    %300 = vmatpush1.msra.mxu0 0.0
    %301 = vmatprep.subr.mxu0 0.0
    %302 = vmatpush1.msra.mxu0 0.0
    %303 = vmatprep.subr.mxu0 0.0
    %304 = vmatpush1.msra.mxu0 0.0
    %305 = vmatprep.subr.mxu0 0.0
    %v306 = vand.u32 %v44, 4294901760
    %307 = vmatpush1.msra.mxu0 %v306
    %308 = vmatprep.subr.mxu0 0.0
    %309 = vmatpush2.msra.mxu0 0.0
    %310 = vmatprep.subr.mxu0 0.0
    %311 = vmatpush2.msra.mxu0 0.0
    %312 = vmatprep.subr.mxu0 0.0
    %313 = vmatpush2.msra.mxu0 0.0
    %314 = vmatprep.subr.mxu0 0.0
    %315 = vmatpush2.msra.mxu0 0.0
    %316 = vmatprep.subr.mxu0 0.0
    %317 = vmatpush2.msra.mxu0 0.0
    %318 = vmatprep.subr.mxu0 0.0
    %319 = vmatpush2.msra.mxu0 0.0
    %320 = vmatprep.subr.mxu0 0.0
    %321 = vmatpush2.msra.mxu0 0.0
    %322 = vmatprep.subr.mxu0 0.0
    %323 = vmatpush2.msra.mxu0 0.0
    %324 = vmatprep.subr.mxu0 0.0
    %325 = vmatpush2.msra.mxu0 0.0
    %326 = vmatprep.subr.mxu0 0.0
    %327 = vmatpush2.msra.mxu0 0.0
    %328 = vmatprep.subr.mxu0 0.0
    %329 = vmatpush2.msra.mxu0 0.0
    %330 = vmatprep.subr.mxu0 0.0
    %331 = vmatpush2.msra.mxu0 0.0
    %332 = vmatprep.subr.mxu0 0.0
    %333 = vmatpush2.msra.mxu0 0.0
    %334 = vmatprep.subr.mxu0 0.0
    %335 = vmatpush2.msra.mxu0 0.0
    %336 = vmatprep.subr.mxu0 0.0
    %337 = vmatpush2.msra.mxu0 0.0
    %338 = vmatprep.subr.mxu0 0.0
    %339 = vmatpush2.msra.mxu0 0.0
    %340 = vmatprep.mubr.f32.mxu0 0.0
    %v341 = vand.u32 %v47, 4294901760
    %v342 = vsub.f32 %v47, %v341
    %v343 = vand.u32 %v342, 4294901760
    %344 = vmatmul.mubr.f32.gmra.mxu0 %v343
    %v345 = vpop.f32.mrf.mxu0
    %v346 = vadd.f32 %v272, %v345
    %v347 = vpop.f32.mrf.mxu0
    %348 = vdwg.mxu0
    %349 = vmatprep.subr.mxu0 0.0
    %350 = vmatpush1.msra.mxu0 0.0
    %351 = vmatprep.subr.mxu0 0.0
    %352 = vmatpush1.msra.mxu0 0.0
    %353 = vmatprep.subr.mxu0 0.0
    %354 = vmatpush1.msra.mxu0 0.0
    %355 = vmatprep.subr.mxu0 0.0
    %356 = vmatpush1.msra.mxu0 0.0
    %357 = vmatprep.subr.mxu0 0.0
    %358 = vmatpush1.msra.mxu0 0.0
    %359 = vmatprep.subr.mxu0 0.0
    %360 = vmatpush1.msra.mxu0 0.0
    %361 = vmatprep.subr.mxu0 0.0
    %362 = vmatpush1.msra.mxu0 0.0
    %363 = vmatprep.subr.mxu0 0.0
    %364 = vmatpush1.msra.mxu0 0.0
    %365 = vmatprep.subr.mxu0 0.0
    %366 = vmatpush1.msra.mxu0 0.0
    %367 = vmatprep.subr.mxu0 0.0
    %368 = vmatpush1.msra.mxu0 0.0
    %369 = vmatprep.subr.mxu0 0.0
    %370 = vmatpush1.msra.mxu0 0.0
    %371 = vmatprep.subr.mxu0 0.0
    %372 = vmatpush1.msra.mxu0 0.0
    %373 = vmatprep.subr.mxu0 0.0
    %374 = vmatpush1.msra.mxu0 0.0
    %375 = vmatprep.subr.mxu0 0.0
    %376 = vmatpush1.msra.mxu0 0.0
    %377 = vmatprep.subr.mxu0 0.0
    %378 = vmatpush1.msra.mxu0 0.0
    %379 = vmatprep.subr.mxu0 0.0
    %v380 = vand.u32 %v44, 4294901760
    %v381 = vsub.f32 %v44, %v380
    %v382 = vand.u32 %v381, 4294901760
    %383 = vmatpush1.msra.mxu0 %v382
    %384 = vmatprep.subr.mxu0 0.0
    %385 = vmatpush2.msra.mxu0 0.0
    %386 = vmatprep.subr.mxu0 0.0
    %387 = vmatpush2.msra.mxu0 0.0
    %388 = vmatprep.subr.mxu0 0.0
    %389 = vmatpush2.msra.mxu0 0.0
    %390 = vmatprep.subr.mxu0 0.0
    %391 = vmatpush2.msra.mxu0 0.0
    %392 = vmatprep.subr.mxu0 0.0
    %393 = vmatpush2.msra.mxu0 0.0
    %394 = vmatprep.subr.mxu0 0.0
    %395 = vmatpush2.msra.mxu0 0.0
    %396 = vmatprep.subr.mxu0 0.0
    %397 = vmatpush2.msra.mxu0 0.0
    %398 = vmatprep.subr.mxu0 0.0
    %399 = vmatpush2.msra.mxu0 0.0
    %400 = vmatprep.subr.mxu0 0.0
    %401 = vmatpush2.msra.mxu0 0.0
    %402 = vmatprep.subr.mxu0 0.0
    %403 = vmatpush2.msra.mxu0 0.0
    %404 = vmatprep.subr.mxu0 0.0
    %405 = vmatpush2.msra.mxu0 0.0
    %406 = vmatprep.subr.mxu0 0.0
    %407 = vmatpush2.msra.mxu0 0.0
    %408 = vmatprep.subr.mxu0 0.0
    %409 = vmatpush2.msra.mxu0 0.0
    %410 = vmatprep.subr.mxu0 0.0
    %411 = vmatpush2.msra.mxu0 0.0
    %412 = vmatprep.subr.mxu0 0.0
    %413 = vmatpush2.msra.mxu0 0.0
    %414 = vmatprep.subr.mxu0 0.0
    %415 = vmatpush2.msra.mxu0 0.0
    %416 = vmatprep.mubr.f32.mxu0 0.0
    %v417 = vand.u32 %v47, 4294901760
    %418 = vmatmul.mubr.f32.gmra.mxu0 %v417
    %v419 = vpop.f32.mrf.mxu0
    %v420 = vadd.f32 %v346, %v419
    %v421 = vpop.f32.mrf.mxu0
    %422 = vdwg.mxu0
    %423 = vmatprep.subr.mxu0 0.0
    %424 = vmatpush1.msra.mxu0 0.0
    %425 = vmatprep.subr.mxu0 0.0
    %426 = vmatpush1.msra.mxu0 0.0
    %427 = vmatprep.subr.mxu0 0.0
    %428 = vmatpush1.msra.mxu0 0.0
    %429 = vmatprep.subr.mxu0 0.0
    %430 = vmatpush1.msra.mxu0 0.0
    %431 = vmatprep.subr.mxu0 0.0
    %432 = vmatpush1.msra.mxu0 0.0
    %433 = vmatprep.subr.mxu0 0.0
    %434 = vmatpush1.msra.mxu0 0.0
    %435 = vmatprep.subr.mxu0 0.0
    %436 = vmatpush1.msra.mxu0 0.0
    %437 = vmatprep.subr.mxu0 0.0
    %438 = vmatpush1.msra.mxu0 0.0
    %439 = vmatprep.subr.mxu0 0.0
    %440 = vmatpush1.msra.mxu0 0.0
    %441 = vmatprep.subr.mxu0 0.0
    %442 = vmatpush1.msra.mxu0 0.0
    %443 = vmatprep.subr.mxu0 0.0
    %444 = vmatpush1.msra.mxu0 0.0
    %445 = vmatprep.subr.mxu0 0.0
    %446 = vmatpush1.msra.mxu0 0.0
    %447 = vmatprep.subr.mxu0 0.0
    %448 = vmatpush1.msra.mxu0 0.0
    %449 = vmatprep.subr.mxu0 0.0
    %450 = vmatpush1.msra.mxu0 0.0
    %451 = vmatprep.subr.mxu0 0.0
    %452 = vmatpush1.msra.mxu0 0.0
    %453 = vmatprep.subr.mxu0 0.0
    %v454 = vand.u32 %v44, 4294901760
    %455 = vmatpush1.msra.mxu0 %v454
    %456 = vmatprep.subr.mxu0 0.0
    %457 = vmatpush2.msra.mxu0 0.0
    %458 = vmatprep.subr.mxu0 0.0
    %459 = vmatpush2.msra.mxu0 0.0
    %460 = vmatprep.subr.mxu0 0.0
    %461 = vmatpush2.msra.mxu0 0.0
    %462 = vmatprep.subr.mxu0 0.0
    %463 = vmatpush2.msra.mxu0 0.0
    %464 = vmatprep.subr.mxu0 0.0
    %465 = vmatpush2.msra.mxu0 0.0
    %466 = vmatprep.subr.mxu0 0.0
    %467 = vmatpush2.msra.mxu0 0.0
    %468 = vmatprep.subr.mxu0 0.0
    %469 = vmatpush2.msra.mxu0 0.0
    %470 = vmatprep.subr.mxu0 0.0
    %471 = vmatpush2.msra.mxu0 0.0
    %472 = vmatprep.subr.mxu0 0.0
    %473 = vmatpush2.msra.mxu0 0.0
    %474 = vmatprep.subr.mxu0 0.0
    %475 = vmatpush2.msra.mxu0 0.0
    %476 = vmatprep.subr.mxu0 0.0
    %477 = vmatpush2.msra.mxu0 0.0
    %478 = vmatprep.subr.mxu0 0.0
    %479 = vmatpush2.msra.mxu0 0.0
    %480 = vmatprep.subr.mxu0 0.0
    %481 = vmatpush2.msra.mxu0 0.0
    %482 = vmatprep.subr.mxu0 0.0
    %483 = vmatpush2.msra.mxu0 0.0
    %484 = vmatprep.subr.mxu0 0.0
    %485 = vmatpush2.msra.mxu0 0.0
    %486 = vmatprep.subr.mxu0 0.0
    %487 = vmatpush2.msra.mxu0 0.0
    %488 = vmatprep.mubr.f32.mxu0 0.0
    %v489 = vand.u32 %v47, 4294901760
    %490 = vmatmul.mubr.f32.gmra.mxu0 %v489
    %v491 = vpop.f32.mrf.mxu0
    %v492 = vadd.f32 %v420, %v491
    %v493 = vpop.f32.mrf.mxu0
    %494 = vdwg.mxu0
    %v495 = vand.u32 2147483647, %v492
    %vm496 = vcmp.le.f32.partialorder %v495, 0.7853982
    %vm497 = vcmp.lt.s32.totalorder %v492, 0
    %v498 = vand.u32 %v492, 2139095040
    %v499 = vshrl.u32 %v498, 23
    %v500 = vsub.s32 %v499, 127
    %v501 = vand.u32 2147483647, %v492
    %v502 = vand.u32 %v501, 8388607
    %v503 = vor.u32 %v502, 8388608
    %v504 = vsub.s32 0, %v503
    %v505 = vadd.s32 %v500, 1
    %vm506 = vcmp.gt.s32.totalorder %v505, 0
    %v507 = vsel %vm506, %v505, 0
    %v508 = vshrl.u32 %v507, 5
    %v509 = vand.u32 %v507, 31
    %v510 = vsub.s32 32, %v509
    %v511 = vshrl.u32 683565275, %v510
    %v512 = vshll.u32 683565275, %v509
    %v513 = vshrl.u32 2475754826, %v510
    %v514 = vor.u32 %v512, %v513
    %v515 = vshll.u32 2475754826, %v509
    %v516 = vshrl.u32 2131351028, %v510
    %v517 = vor.u32 %v515, %v516
    %v518 = vshll.u32 2131351028, %v509
    %v519 = vshrl.u32 2102212464, %v510
    %v520 = vor.u32 %v518, %v519
    %v521 = vshll.u32 2102212464, %v509
    %v522 = vshrl.u32 920167782, %v510
    %v523 = vor.u32 %v521, %v522
    %v524 = vshll.u32 920167782, %v509
    %v525 = vshrl.u32 1326507024, %v510
    %v526 = vor.u32 %v524, %v525
    %vm527 = vcmp.lt.s32.totalorder %v508, 1
    %vm528 = vcmp.lt.s32.totalorder %v508, 2
    %vm529 = vcmp.lt.s32.totalorder %v508, 3
    %vm530 = vcmp.lt.s32.totalorder %v508, 4
    %v531 = vsel %vm527, %v511, %v514
    %v532 = vsel %vm530, %v520, 2102212464
    %v533 = vsel %vm529, %v517, %v532
    %v534 = vsel %vm528, %v531, %v533
    %v535 = vsel %vm527, %v514, %v517
    %v536 = vsel %vm530, %v523, 920167782
    %v537 = vsel %vm529, %v520, %v536
    %v538 = vsel %vm528, %v535, %v537
    %v539 = vsel %vm527, %v517, %v520
    %v540 = vsel %vm530, %v526, 1326507024
    %v541 = vsel %vm529, %v523, %v540
    %v542 = vsel %vm528, %v539, %v541
    %v543 = vshll.u32 %v503, 8
    %v544 = vmul.u32.u64.compose %v543, %v542
    %v545 = vextract.low.u32 %v544
    %v546 = vextract.high.u32 %v544
    %v547 = vmul.u32.u64.compose %v543, %v538
    %v548 = vextract.low.u32 %v547
    %v549 = vextract.high.u32 %v547
    %v550 = vmul.u32 %v543, %v534
    %v551 = vadd.s32 %v546, %v548
    %vm552 = vc.u32 %v546, %v548
    %v553 = vadd.s32 %v549, 1
    %v554 = vsel %vm552, %v553, %v549
    %v555 = vadd.s32 %v550, %v554
    %v556 = vadd.s32 %v555, 536870912
    %v557 = vshrl.u32 %v556, 30
    %v558 = vshll.u32 %v557, 30
    %v559 = vsub.s32 %v555, %v558
    %vm560 = vcmp.lt.s32.totalorder %v559, 0
    %v561 = vsub.s32 0, %v559
    %v562 = vsel %vm560, %v561, %v559
    %v563 = vclz %v562
    %v564 = vsub.s32 %v563, 2
    %vm565 = vcmp.gt.s32.totalorder 0, %v564
    %v566 = vsel %vm565, 0, %v564
    %v567 = vsub.s32 32, %v566
    %v568 = vshll.u32 %v559, %v566
    %v569 = vshrl.u32 %v551, %v567
    %v570 = vor.u32 %v568, %v569
    %v571 = vsub.s32 4294967266, %v566
    %v572 = vadd.s32 %v571, 127
    %v573 = vshll.u32 %v572, 23
    %v574 = vor.u32 4788187, %v573
    %v575 = vand.u32 2147483647, %v574
    %v577 = vcvt.s32.f32 %v570
    %v578 = vmul.f32 %v577, %v575
    %v579 = vxor.u32 %v578, 2147483648
    %v580 = vsel %vm497, %v579, %v578
    %v581 = vsub.s32 4, %v557
    %v582 = vsel %vm497, %v581, %v557
    %v583 = vsel %vm496, %v492, %v580
    %v584 = vsel %vm496, 0, %v582
    %v585 = vcosq.f32.pop %v583
    %v586 = vsinq.f32.pop %v583
    %vm587 = vweird.f32 %v492
    %v588 = vadd.s32 %v584, 3
    %v589 = vand.u32 %v588, 3
    %vm590 = vcmp.lt.s32.totalorder %v589, 2
    %vm591 = vcmp.eq.s32.totalorder %v589, 0
    %v592 = vxor.u32 %v586, 2147483648
    %v593 = vsel %vm591, %v585, %v592
    %vm594 = vcmp.eq.s32.totalorder %v589, 2
    %v595 = vxor.u32 %v585, 2147483648
    %v596 = vsel %vm594, %v595, %v586
    %v597 = vsel %vm590, %v593, %v596
    %v598 = vsel %vm587, nan, %v597
    %s599 = sld [smem:[#allocation2]]
    %v600 = vstv %s599
    %v601 = vmul.f32 %v600, %v598
    %v602 = vld [vmem:[%s2] sm:$0x1]
    %v604 = vlaneseq
    %v605 = vshrl.u32 %v604, 7
    %v606 = vsub.s32 0, %v605
    %v607 = vrot.slane %v602, %v606
    %v609 = vadd.f32 %v601, %v607
    %610 = vst [vmem:[#allocation8] sm:$0xff] %v609
    // Predicated region
    $region26: #{tpu_custom_call.1} parent=1 // pred_check
      _
    $region27: #{tpu_custom_call.1} parent=1 // pred_check_branch
      %612 = sbr.rel (0) target = $region29
    $region28: #{tpu_custom_call.1} parent=1 // pred_region
      %s614 = ssub.s32 128, 128
      %615 = vsyncadd [#allocation5], %s614
      %s617 = sshll.u32 [#allocation8], 4
      %s618 = int_to_ptr.vmem [resolvable:$true] %s617
      %620 = dma.vmem_to_hbm [thread:$0]  %s618, 128, %s4, [#allocation5]
    $region29: #{tpu_custom_call.1} parent=1 // pred_fallthru
      _
    // Predicated region
    $region30: #{tpu_custom_call.1} parent=1 // pred_check
      _
    $region31: #{tpu_custom_call.1} parent=1 // pred_check_branch
      %622 = sbr.rel (0) target = $region33
    $region32: #{tpu_custom_call.1} parent=1 // pred_region
      %623 = dma.done [#allocation5], 128
    $region33: #{tpu_custom_call.1} parent=1 // pred_fallthru
      _
    %624 = vsyncpa [#allocation4], 1
    %625 = vsyncpa [#allocation7], 1
    %626 = vsyncpa [#allocation5], 1

</llo_original>
